<compile_context>
chip_gen: v6e
topology: v6e:2x2x1
jax: 0.10.0
libtpu: 0.0.40
codegen_flags: <defaults>
</compile_context>

<pallas_src>
import jax
import jax.numpy as jnp
from jax.experimental import pallas as pl
from jax.experimental.pallas import tpu as pltpu


def attention_kernel(hid_ref, enc_ref, wh_ref, we_ref, b_ref, v_ref, out_ref):
    # hid_ref : (TB, H)     bf16  batch tile of hidden states
    # enc_ref : (S, TB, H)  bf16  encoder outputs, native seq-first layout
    # wh_ref  : (H, H)      bf16  weight applied to `hidden`       (resident)
    # we_ref  : (H, H)      bf16  weight applied to encoder outputs (resident)
    # b_ref   : (1, H)      f32   attn bias
    # v_ref   : (1, H)      f32   scoring vector
    # out_ref : (TB, S)     f32   softmaxed attention weights (lane-dense in S)
    S, TB, H = enc_ref.shape

    # Hidden projection + bias, once per batch tile: (TB,H) @ (H,H) on the MXU.
    h_proj = jnp.dot(hid_ref[...], wh_ref[...],
                     preferred_element_type=jnp.float32)            # (TB, H) f32
    hb = h_proj + b_ref[...]                                        # bias folded once

    # Encoder projection as ONE matmul over the flattened (S*TB, H) tile.
    # (View-reshape when TB is sublane-aligned; tiny copy otherwise.)
    enc_flat = enc_ref[...].reshape(S * TB, H)
    e_proj = jnp.dot(enc_flat, we_ref[...],
                     preferred_element_type=jnp.float32)            # (S*TB, H) f32
    e_proj = e_proj.reshape(S, TB, H)

    # energy = tanh(enc @ We + hidden @ Wh + b), computed in native (S, TB, H).
    # (f32 tanh for portability; bf16 tanh would double EUP rate on v6e/v7x.)
    energy = jnp.tanh(e_proj + hb[None, :, :])                      # (S, TB, H)

    # scores[s, b] = <v, energy[s, b, :]> : VPU multiply + XLU lane reduction.
    scores = jnp.sum(energy * v_ref[...][None, :, :], axis=-1)      # (S, TB)

    # Small XLU transpose so the softmax reduces over lanes and the output is
    # stored lane-dense as (TB, S).
    scores_t = jnp.transpose(scores, (1, 0))                        # (TB, S)

    # Numerically-stable softmax over the sequence axis; divide -> reciprocal.
    m = jnp.max(scores_t, axis=-1, keepdims=True)
    p = jnp.exp(scores_t - m)
    denom = jnp.sum(p, axis=-1, keepdims=True)
    out_ref[...] = (p * pl.reciprocal(denom, approx=True)).astype(out_ref.dtype)


def _pick_batch_tile(B, S, H, enc_itemsize, vmem_budget_bytes=28 * 1024 * 1024):
    """Largest sublane-aligned batch tile whose per-step VMEM footprint fits the
    budget, keeping >= 2 grid steps when B allows (v7x megacore sharding)."""
    def footprint(tb):
        enc_tile = 2 * S * tb * H * enc_itemsize      # double-buffered stream
        f32_tmp = 2 * S * tb * H * 4                  # e_proj / energy temporaries
        weights = 2 * H * H * enc_itemsize            # resident Wh / We
        small = 2 * (tb * H * enc_itemsize + tb * S * 4)
        return enc_tile + f32_tmp + weights + small

    if B <= 8:
        return B                                      # single (full) tile
    tb = 8
    while tb * 2 <= B and footprint(tb * 2) <= vmem_budget_bytes:
        tb *= 2
    if tb >= B:          # keep >= 2 grid steps so both v7x TensorCores get work
        tb = max(8, tb // 2)
    return tb


def attention_forward(hidden, encoder_outputs, W, b, v,
                      compute_dtype=jnp.bfloat16):
    """hidden: [B, H]; encoder_outputs: [S, B, H] (native seq-first layout);
    W: [H, 2H] (nn.Linear(2H, H).weight); b: [H]; v: [H].  Returns [B, S]."""
    B, H = hidden.shape
    S = encoder_outputs.shape[0]

    # Weight split stays in plain JAX (tiny).  Streamed operands are cast to
    # bf16 (in a real pipeline this fuses with the producer); accumulation and
    # the transcendental / softmax path stay f32.
    Wt = W.T
    Wh = Wt[:H].astype(compute_dtype)                  # applied to `hidden`
    We = Wt[H:].astype(compute_dtype)                  # applied to encoder outputs
    hid = hidden.astype(compute_dtype)
    enc = encoder_outputs.astype(compute_dtype)        # NO transpose: native [S,B,H]
    b2 = b.reshape(1, H).astype(jnp.float32)
    v2 = v.reshape(1, H).astype(jnp.float32)

    TB = _pick_batch_tile(B, S, H, jnp.dtype(compute_dtype).itemsize)

    return pl.pallas_call(
        attention_kernel,
        out_shape=jax.ShapeDtypeStruct((B, S), jnp.float32),
        grid_spec=pltpu.PrefetchScalarGridSpec(
            num_scalar_prefetch=0,
            grid=(pl.cdiv(B, TB),),
            in_specs=[
                pl.BlockSpec((TB, H), lambda i: (i, 0)),        # hidden tile
                pl.BlockSpec((S, TB, H), lambda i: (0, i, 0)),  # encoder tile (native layout)
                pl.BlockSpec((H, H), lambda i: (0, 0)),         # Wh (resident)
                pl.BlockSpec((H, H), lambda i: (0, 0)),         # We (resident)
                pl.BlockSpec((1, H), lambda i: (0, 0)),         # bias
                pl.BlockSpec((1, H), lambda i: (0, 0)),         # v
            ],
            out_specs=pl.BlockSpec((TB, S), lambda i: (i, 0)),  # lane-dense (B, S)
        ),
        compiler_params=pltpu.CompilerParams(
            dimension_semantics=("parallel",),
            # Raise the scoped VMEM limit (16 MiB default on v5e, 32 MiB on
            # v6e/v7x) so the byte-budgeted tiles above actually fit; stays
            # under v7x's 64 MiB physical VMEM.
            vmem_limit_bytes=48 * 1024 * 1024,
        ),
    )(hid, enc, Wh, We, b2, v2)


def attention_ref(hidden, encoder_outputs, W, b, v):
    """Pure-JAX reference mirroring the PyTorch forward exactly."""
    S = encoder_outputs.shape[0]
    hid = jnp.repeat(hidden[:, None, :], S, axis=1)        # [B, S, H]
    enc = jnp.transpose(encoder_outputs, (1, 0, 2))        # [B, S, H]
    cat = jnp.concatenate([hid, enc], axis=2)              # [B, S, 2H]
    energy = jnp.tanh(cat @ W.T + b)                       # [B, S, H]
    scores = jnp.einsum("h,bsh->bs", v, energy)            # [B, S]
    return jax.nn.softmax(scores, axis=1)


if __name__ == "__main__":
    B, S, H = 8, 16, 32

    key = jax.random.PRNGKey(0)
    k1, k2, k3, k4, k5 = jax.random.split(key, 5)

    # Deterministic parameter init (matches nn.Linear(2H, H) + torch.rand(H) shapes).
    bound = 1.0 / jnp.sqrt(2.0 * H)
    W = jax.random.uniform(k1, (H, 2 * H), jnp.float32, -bound, bound)  # attn.weight
    b = jax.random.uniform(k2, (H,), jnp.float32, -bound, bound)        # attn.bias
    v = jax.random.uniform(k3, (H,), jnp.float32, 0.0, 1.0)             # self.v

    hidden = jax.random.normal(k4, (B, H), jnp.float32)
    encoder_outputs = jax.random.normal(k5, (S, B, H), jnp.float32)

    out = attention_forward(hidden, encoder_outputs, W, b, v)
    out = jax.block_until_ready(out)
    assert out.shape == (B, S)

    # Tight check: f32 reference fed with the same bf16-quantized operands the
    # kernel streams (isolates approx-reciprocal / transcendental differences).
    f32 = jnp.float32
    ref_q = attention_ref(hidden.astype(jnp.bfloat16).astype(f32),
                          encoder_outputs.astype(jnp.bfloat16).astype(f32),
                          W.astype(jnp.bfloat16).astype(f32), b, v)
    assert jnp.allclose(out, ref_q, atol=5e-3, rtol=5e-3)

    # Loose check against the pure-f32 reference (bf16 streaming tolerance).
    ref = attention_ref(hidden, encoder_outputs, W, b, v)
    assert jnp.allclose(out, ref, atol=5e-2, rtol=5e-2)

    print("KERNEL_OK")
</pallas_src>

<mosaic_0001>
module attributes {stable_mosaic.version = 11 : i64} {
  func.func @attention_kernel(%arg0: i32, %arg1: memref<8x32xbf16, #tpu.memory_space<vmem>>, %arg2: memref<16x8x32xbf16, #tpu.memory_space<vmem>>, %arg3: memref<32x32xbf16, #tpu.memory_space<vmem>>, %arg4: memref<32x32xbf16, #tpu.memory_space<vmem>>, %arg5: memref<1x32xf32, #tpu.memory_space<vmem>>, %arg6: memref<1x32xf32, #tpu.memory_space<vmem>>, %arg7: memref<8x16xf32, #tpu.memory_space<vmem>>) attributes {dimension_semantics = [#tpu.dimension_semantics<parallel>], iteration_bounds = array<i64: 1>, scalar_prefetch = 0 : i64, scratch_operands = 0 : i64, tpu.core_type = #tpu.core_type<tc>, window_params = [{transform_indices = @transform_0, window_bounds = array<i64: 8, 32>}, {transform_indices = @transform_1, window_bounds = array<i64: 16, 8, 32>}, {pipeline_mode = #tpu.pipeline_mode<synchronous>, transform_indices = @transform_2, window_bounds = array<i64: 32, 32>}, {pipeline_mode = #tpu.pipeline_mode<synchronous>, transform_indices = @transform_3, window_bounds = array<i64: 32, 32>}, {pipeline_mode = #tpu.pipeline_mode<synchronous>, transform_indices = @transform_4, window_bounds = array<i64: 1, 32>}, {pipeline_mode = #tpu.pipeline_mode<synchronous>, transform_indices = @transform_5, window_bounds = array<i64: 1, 32>}, {transform_indices = @transform_6, window_bounds = array<i64: 8, 16>}]} {
    %c0 = arith.constant 0 : index
    %c0_0 = arith.constant 0 : index
    %0 = vector.load %arg1[%c0, %c0_0] : memref<8x32xbf16, #tpu.memory_space<vmem>>, vector<8x32xbf16>
    %c0_1 = arith.constant 0 : index
    %c0_2 = arith.constant 0 : index
    %1 = vector.load %arg3[%c0_1, %c0_2] : memref<32x32xbf16, #tpu.memory_space<vmem>>, vector<32x32xbf16>
    %cst = arith.constant dense<0.000000e+00> : vector<8x32xf32>
    %2 = tpu.matmul %0, %1, %cst {dimension_numbers = #tpu.dot_dimension_numbers<[1], [0], [0], [1], [0, 0, 1, 1], [], []>} : vector<8x32xbf16>, vector<32x32xbf16>, vector<8x32xf32> -> vector<8x32xf32>
    %c0_3 = arith.constant 0 : index
    %c0_4 = arith.constant 0 : index
    %3 = vector.load %arg5[%c0_3, %c0_4] : memref<1x32xf32, #tpu.memory_space<vmem>>, vector<1x32xf32>
    %4 = vector.broadcast %3 : vector<1x32xf32> to vector<8x32xf32>
    %5 = arith.addf %2, %4 : vector<8x32xf32>
    %c0_5 = arith.constant 0 : index
    %c0_6 = arith.constant 0 : index
    %c0_7 = arith.constant 0 : index
    %6 = vector.load %arg2[%c0_5, %c0_6, %c0_7] : memref<16x8x32xbf16, #tpu.memory_space<vmem>>, vector<16x8x32xbf16>
    %7 = vector.shape_cast %6 : vector<16x8x32xbf16> to vector<128x32xbf16>
    %c0_8 = arith.constant 0 : index
    %c0_9 = arith.constant 0 : index
    %8 = vector.load %arg4[%c0_8, %c0_9] : memref<32x32xbf16, #tpu.memory_space<vmem>>, vector<32x32xbf16>
    %cst_10 = arith.constant dense<0.000000e+00> : vector<128x32xf32>
    %9 = tpu.matmul %7, %8, %cst_10 {dimension_numbers = #tpu.dot_dimension_numbers<[1], [0], [0], [1], [0, 0, 1, 1], [], []>} : vector<128x32xbf16>, vector<32x32xbf16>, vector<128x32xf32> -> vector<128x32xf32>
    %10 = vector.shape_cast %9 : vector<128x32xf32> to vector<16x8x32xf32>
    %11 = vector.shape_cast %5 : vector<8x32xf32> to vector<1x8x32xf32>
    %12 = vector.broadcast %11 : vector<1x8x32xf32> to vector<16x8x32xf32>
    %13 = arith.addf %10, %12 : vector<16x8x32xf32>
    %14 = math.tanh %13 : vector<16x8x32xf32>
    %c0_11 = arith.constant 0 : index
    %c0_12 = arith.constant 0 : index
    %15 = vector.load %arg6[%c0_11, %c0_12] : memref<1x32xf32, #tpu.memory_space<vmem>>, vector<1x32xf32>
    %16 = vector.shape_cast %15 : vector<1x32xf32> to vector<1x1x32xf32>
    %17 = vector.broadcast %16 : vector<1x1x32xf32> to vector<16x8x32xf32>
    %18 = arith.mulf %14, %17 : vector<16x8x32xf32>
    %cst_13 = arith.constant dense<0.000000e+00> : vector<16x8xf32>
    %19 = vector.multi_reduction <add>, %18, %cst_13 [2] : vector<16x8x32xf32> to vector<16x8xf32>
    %20 = tpu.transpose %19, [1, 0] : vector<16x8xf32> -> vector<8x16xf32>
    %cst_14 = arith.constant dense<0xFF800000> : vector<8xf32>
    %21 = vector.multi_reduction <maximumf>, %20, %cst_14 [1] : vector<8x16xf32> to vector<8xf32>
    %22 = vector.shape_cast %21 : vector<8xf32> to vector<8x1xf32>
    %23 = vector.broadcast %22 : vector<8x1xf32> to vector<8x16xf32>
    %24 = arith.subf %20, %23 : vector<8x16xf32>
    %25 = math.exp %24 : vector<8x16xf32>
    %cst_15 = arith.constant dense<0.000000e+00> : vector<8xf32>
    %26 = vector.multi_reduction <add>, %25, %cst_15 [1] : vector<8x16xf32> to vector<8xf32>
    %27 = vector.shape_cast %26 : vector<8xf32> to vector<8x1xf32>
    %28 = tpu.reciprocal %27 {approx = true} : vector<8x1xf32> -> vector<8x1xf32>
    %29 = vector.broadcast %28 : vector<8x1xf32> to vector<8x16xf32>
    %30 = arith.mulf %25, %29 : vector<8x16xf32>
    %c0_16 = arith.constant 0 : index
    %c0_17 = arith.constant 0 : index
    %31 = vector.load %arg7[%c0_16, %c0_17] : memref<8x16xf32, #tpu.memory_space<vmem>>, vector<8x16xf32>
    tpu.vector_store %arg7[%c0_16, %c0_17], %30 {strides = array<i32>} : memref<8x16xf32, #tpu.memory_space<vmem>>, vector<8x16xf32>,
    return
  }
  func.func @transform_0(%arg0: i32) -> (i32, i32) {
    %c0_i32 = arith.constant 0 : i32
    %c0_i32_0 = arith.constant 0 : i32
    return %arg0, %c0_i32 : i32, i32
  }
  func.func @transform_1(%arg0: i32) -> (i32, i32, i32) {
    %c0_i32 = arith.constant 0 : i32
    %c0_i32_0 = arith.constant 0 : i32
    %c0_i32_1 = arith.constant 0 : i32
    return %c0_i32, %arg0, %c0_i32_0 : i32, i32, i32
  }
  func.func @transform_2(%arg0: i32) -> (i32, i32) {
    %c0_i32 = arith.constant 0 : i32
    %c0_i32_0 = arith.constant 0 : i32
    %c0_i32_1 = arith.constant 0 : i32
    return %c0_i32, %c0_i32_0 : i32, i32
  }
  func.func @transform_3(%arg0: i32) -> (i32, i32) {
    %c0_i32 = arith.constant 0 : i32
    %c0_i32_0 = arith.constant 0 : i32
    %c0_i32_1 = arith.constant 0 : i32
    return %c0_i32, %c0_i32_0 : i32, i32
  }
  func.func @transform_4(%arg0: i32) -> (i32, i32) {
    %c0_i32 = arith.constant 0 : i32
    %c0_i32_0 = arith.constant 0 : i32
    %c0_i32_1 = arith.constant 0 : i32
    return %c0_i32, %c0_i32_0 : i32, i32
  }
  func.func @transform_5(%arg0: i32) -> (i32, i32) {
    %c0_i32 = arith.constant 0 : i32
    %c0_i32_0 = arith.constant 0 : i32
    %c0_i32_1 = arith.constant 0 : i32
    return %c0_i32, %c0_i32_0 : i32, i32
  }
  func.func @transform_6(%arg0: i32) -> (i32, i32) {
    %c0_i32 = arith.constant 0 : i32
    %c0_i32_0 = arith.constant 0 : i32
    return %arg0, %c0_i32 : i32, i32
  }
}

</mosaic_0001>

<llo_original>
// kernel: tpu_custom_call.1
$region0: #{tpu_custom_call.1}
  #allocation0 [shape = 'u32[]', space=smem, size = 0x4, offset = 0x4, fixed_abs, tag = 'smem constant byte address 0x4 - core index']
  #allocation1 [shape = 'u32[144,128]{1,0:T(1,128)}', space=vmem, size = 0x12000, scoped, tag = 'internal scratch']
  %s0 = inlined_call_operand.hbm [shape: bf16[8,32], index: 0, kind: input, shape index: {}]
  %s1 = inlined_call_operand.hbm [shape: bf16[16,8,32], index: 1, kind: input, shape index: {}]
  %s2 = inlined_call_operand.hbm [shape: bf16[32,32], index: 2, kind: input, shape index: {}]
  %s3 = inlined_call_operand.hbm [shape: bf16[32,32], index: 3, kind: input, shape index: {}]
  %s4 = inlined_call_operand.vmem [shape: f32[1,32], index: 4, kind: input, shape index: {}]
  %s5 = inlined_call_operand.vmem [shape: f32[1,32], index: 5, kind: input, shape index: {}]
  %s6 = inlined_call_operand.hbm [shape: f32[8,16], index: 6, kind: output, shape index: {}]
  %s7 = sld [smem:[#allocation0]]
  $region50: #{tpu_custom_call.1} parent=0
    _
  %s9 = ssub.s32 1, %s7
  %s10 = scalar_select 0, %s9, %s7
  $region1: #{tpu_custom_call.1} parent=0
    #allocation2 [shape = 'u8[2048]{0}', space=vmem, size = 0x800, scoped, tag = 'input window, operand 0, single buffered']
    #allocation3 [shape = 's32[1]{0}', space=sflag, size = 0x4, scoped, tag = 'scoped memory for tpu_custom_call.1']
    #allocation4 [shape = 's32[1]{0}', space=sflag, size = 0x4, scoped, tag = 'scoped memory for tpu_custom_call.1']
    #allocation5 [shape = 'u8[32768]{0}', space=vmem, size = 0x8000, scoped, tag = 'input window, operand 1, single buffered']
    #allocation6 [shape = 's32[1]{0}', space=sflag, size = 0x4, scoped, tag = 'scoped memory for tpu_custom_call.1']
    #allocation7 [shape = 'u8[8192]{0}', space=vmem, size = 0x2000, scoped, tag = 'input window, operand 2, single buffered']
    #allocation8 [shape = 'u8[8192]{0}', space=vmem, size = 0x2000, scoped, tag = 'input window, operand 3, single buffered']
    #allocation9 [shape = 's32[1]{0}', space=sflag, size = 0x4, scoped, tag = 'scoped memory for tpu_custom_call.1']
    #allocation10 [shape = 'u8[4096]{0}', space=vmem, size = 0x1000, scoped, tag = 'output window, operand 0, single buffered']
    %11 = vsyncpa [#allocation3], 0
    %12 = vsyncpa [#allocation6], 0
    %13 = vsyncpa [#allocation9], 0
    %14 = vsyncpa [#allocation4], 0
    // Predicated region
    $region2: #{tpu_custom_call.1} parent=1 // pred_check
      _
    $region3: #{tpu_custom_call.1} parent=1 // pred_check_branch
      %16 = sbr.rel (0) target = $region5
    $region4: #{tpu_custom_call.1} parent=1 // pred_region
      %s18 = ssub.s32 64, 64
      %19 = vsyncadd [#allocation3], %s18
      %s21 = sshll.u32 [#allocation2], 4
      %s22 = int_to_ptr.vmem [resolvable:$true] %s21
      %24 = dma.hbm_to_vmem [thread:$0]  %s0, 64, %s22, [#allocation3]
    $region5: #{tpu_custom_call.1} parent=1 // pred_fallthru
      _
    // Predicated region
    $region6: #{tpu_custom_call.1} parent=1 // pred_check
      _
    $region7: #{tpu_custom_call.1} parent=1 // pred_check_branch
      %26 = sbr.rel (0) target = $region9
    $region8: #{tpu_custom_call.1} parent=1 // pred_region
      %s28 = ssub.s32 1024, 1024
      %29 = vsyncadd [#allocation6], %s28
      %s30 = sshll.u32 [#allocation5], 4
      %s31 = int_to_ptr.vmem [resolvable:$true] %s30
      %36 = dma.hbm_to_vmem [thread:$0]  %s1, 1024, %s31, [#allocation6], 64, 64, 4
    $region9: #{tpu_custom_call.1} parent=1 // pred_fallthru
      _
    // Predicated region
    $region10: #{tpu_custom_call.1} parent=1 // pred_check
      _
    $region11: #{tpu_custom_call.1} parent=1 // pred_check_branch
      %38 = sbr.rel (0) target = $region13
    $region12: #{tpu_custom_call.1} parent=1 // pred_region
      %s40 = ssub.s32 256, 256
      %41 = vsyncadd [#allocation6], %s40
      %s42 = sshll.u32 [#allocation7], 4
      %s43 = int_to_ptr.vmem [resolvable:$true] %s42
      %48 = dma.hbm_to_vmem [thread:$0]  %s2, 256, %s43, [#allocation6], 64, 64, 4
    $region13: #{tpu_custom_call.1} parent=1 // pred_fallthru
      _
    // Predicated region
    $region14: #{tpu_custom_call.1} parent=1 // pred_check
      _
    $region15: #{tpu_custom_call.1} parent=1 // pred_check_branch
      %50 = sbr.rel (0) target = $region17
    $region16: #{tpu_custom_call.1} parent=1 // pred_region
      %s52 = ssub.s32 256, 256
      %53 = vsyncadd [#allocation9], %s52
      %s54 = sshll.u32 [#allocation8], 4
      %s55 = int_to_ptr.vmem [resolvable:$true] %s54
      %60 = dma.hbm_to_vmem [thread:$0]  %s3, 256, %s55, [#allocation9], 64, 64, 4
    $region17: #{tpu_custom_call.1} parent=1 // pred_fallthru
      _
    // Predicated region
    $region18: #{tpu_custom_call.1} parent=1 // pred_check
      _
    $region19: #{tpu_custom_call.1} parent=1 // pred_check_branch
      %62 = sbr.rel (0) target = $region21
    $region20: #{tpu_custom_call.1} parent=1 // pred_region
      _
    $region21: #{tpu_custom_call.1} parent=1 // pred_fallthru
      _
    // Predicated region
    $region22: #{tpu_custom_call.1} parent=1 // pred_check
      _
    $region23: #{tpu_custom_call.1} parent=1 // pred_check_branch
      %64 = sbr.rel (0) target = $region25
    $region24: #{tpu_custom_call.1} parent=1 // pred_region
      _
    $region25: #{tpu_custom_call.1} parent=1 // pred_fallthru
      _
    // Predicated region
    $region26: #{tpu_custom_call.1} parent=1 // pred_check
      _
    $region27: #{tpu_custom_call.1} parent=1 // pred_check_branch
      %66 = sbr.rel (0) target = $region29
    $region28: #{tpu_custom_call.1} parent=1 // pred_region
      %67 = dma.done [#allocation3], 64
    $region29: #{tpu_custom_call.1} parent=1 // pred_fallthru
      _
    // Predicated region
    $region30: #{tpu_custom_call.1} parent=1 // pred_check
      _
    $region31: #{tpu_custom_call.1} parent=1 // pred_check_branch
      %69 = sbr.rel (0) target = $region33
    $region32: #{tpu_custom_call.1} parent=1 // pred_region
      %70 = dma.done [#allocation6], 1024
    $region33: #{tpu_custom_call.1} parent=1 // pred_fallthru
      _
    // Predicated region
    $region34: #{tpu_custom_call.1} parent=1 // pred_check
      _
    $region35: #{tpu_custom_call.1} parent=1 // pred_check_branch
      %72 = sbr.rel (0) target = $region37
    $region36: #{tpu_custom_call.1} parent=1 // pred_region
      %73 = dma.done [#allocation6], 256
    $region37: #{tpu_custom_call.1} parent=1 // pred_fallthru
      _
    // Predicated region
    $region38: #{tpu_custom_call.1} parent=1 // pred_check
      _
    $region39: #{tpu_custom_call.1} parent=1 // pred_check_branch
      %75 = sbr.rel (0) target = $region41
    $region40: #{tpu_custom_call.1} parent=1 // pred_region
      %76 = dma.done [#allocation9], 256
    $region41: #{tpu_custom_call.1} parent=1 // pred_fallthru
      _
    %v78 = vld [vmem:[#allocation2] sm:$0xf]
    %v79 = vld [vmem:[#allocation7] sm:$0xf]
    %v80 = vld [vmem:[#allocation7 + $0x4] sm:$0xf]
    %v81 = vld [vmem:[#allocation7 + $0x8] sm:$0xf]
    %v82 = vld [vmem:[#allocation7 + $0xc] sm:$0xf]
    %v83 = vld [vmem:[%s4] sm:$0x1]
    %v85 = vlaneseq
    %v86 = vshrl.u32 %v85, 7
    %v87 = vsub.s32 0, %v86
    %v88 = vrot.slane %v83, %v87
    %v94 = vunpack.c.l.b16 %v79
    %v95 = vunpack.c.l.b16 %v80
    %v96 = vunpack.c.l.b16 %v81
    %v97 = vunpack.c.l.b16 %v82
    %v98 = vpack.c.b16 %v95, %v94
    %v99 = vpack.c.b16 %v97, %v96
    %vm102 = vcmask 261120
    %v104 = vsel %vm102, %v78, 0
    %106 = vmatprep.subr.bf16.mxu0 0
    %107 = vmatpush1.bf16.msra.mxu0 0
    %108 = vmatprep.subr.bf16.mxu0 0
    %109 = vmatpush1.bf16.msra.mxu0 0
    %110 = vmatprep.subr.bf16.mxu0 0
    %111 = vmatpush1.bf16.msra.mxu0 0
    %112 = vmatprep.subr.bf16.mxu0 0
    %113 = vmatpush1.bf16.msra.mxu0 0
    %114 = vmatprep.subr.bf16.mxu0 0
    %115 = vmatpush1.bf16.msra.mxu0 0
    %116 = vmatprep.subr.bf16.mxu0 0
    %117 = vmatpush1.bf16.msra.mxu0 0
    %118 = vmatprep.subr.bf16.mxu0 0
    %119 = vmatpush1.bf16.msra.mxu0 %v99
    %120 = vmatprep.subr.bf16.mxu0 0
    %121 = vmatpush1.bf16.msra.mxu0 %v98
    %122 = vmatprep.subr.bf16.mxu0 0
    %123 = vmatpush2.bf16.msra.mxu0 0
    %124 = vmatprep.subr.bf16.mxu0 0
    %125 = vmatpush2.bf16.msra.mxu0 0
    %126 = vmatprep.subr.bf16.mxu0 0
    %127 = vmatpush2.bf16.msra.mxu0 0
    %128 = vmatprep.subr.bf16.mxu0 0
    %129 = vmatpush2.bf16.msra.mxu0 0
    %130 = vmatprep.subr.bf16.mxu0 0
    %131 = vmatpush2.bf16.msra.mxu0 0
    %132 = vmatprep.subr.bf16.mxu0 0
    %133 = vmatpush2.bf16.msra.mxu0 0
    %134 = vmatprep.subr.bf16.mxu0 0
    %135 = vmatpush2.bf16.msra.mxu0 0
    %136 = vmatprep.subr.bf16.mxu0 0
    %137 = vmatpush2.bf16.msra.mxu0 0
    %138 = vmatprep.mubr.bf16.mxu0 0
    %139 = vmatmul.mubr.bf16.gmra.mxu0 %v104
    %v140 = vpop.f32.mrf.mxu0
    %v141 = vadd.f32 %v88, %v140
    %v142 = vpop.f32.mrf.mxu0
    %v143 = vpop.f32.mrf.mxu0
    %v144 = vpop.f32.mrf.mxu0
    %145 = vdwg.mxu0
    %v146 = vld [vmem:[#allocation5] sm:$0xf]
    %v147 = vld [vmem:[#allocation5 + $0x4] sm:$0xf]
    %v148 = vld [vmem:[#allocation5 + $0x8] sm:$0xf]
    %v149 = vld [vmem:[#allocation5 + $0xc] sm:$0xf]
    %v150 = vld [vmem:[#allocation5 + $0x10] sm:$0xf]
    %v151 = vld [vmem:[#allocation5 + $0x14] sm:$0xf]
    %v152 = vld [vmem:[#allocation5 + $0x18] sm:$0xf]
    %v153 = vld [vmem:[#allocation5 + $0x1c] sm:$0xf]
    %v154 = vld [vmem:[#allocation5 + $0x20] sm:$0xf]
    %v155 = vld [vmem:[#allocation5 + $0x24] sm:$0xf]
    %v156 = vld [vmem:[#allocation5 + $0x28] sm:$0xf]
    %v157 = vld [vmem:[#allocation5 + $0x2c] sm:$0xf]
    %v158 = vld [vmem:[#allocation5 + $0x30] sm:$0xf]
    %v159 = vld [vmem:[#allocation5 + $0x34] sm:$0xf]
    %v160 = vld [vmem:[#allocation5 + $0x38] sm:$0xf]
    %v161 = vld [vmem:[#allocation5 + $0x3c] sm:$0xf]
    %v162 = vld [vmem:[#allocation8] sm:$0xf]
    %v163 = vld [vmem:[#allocation8 + $0x4] sm:$0xf]
    %v164 = vld [vmem:[#allocation8 + $0x8] sm:$0xf]
    %v165 = vld [vmem:[#allocation8 + $0xc] sm:$0xf]
    %v182 = vunpack.c.l.b16 %v146
    %v183 = vunpack.c.l.b16 %v147
    %v184 = vunpack.c.l.b16 %v148
    %v185 = vunpack.c.l.b16 %v149
    %v186 = vunpack.c.l.b16 %v150
    %v187 = vunpack.c.l.b16 %v151
    %v188 = vunpack.c.l.b16 %v152
    %v189 = vunpack.c.l.b16 %v153
    %v190 = vunpack.c.l.b16 %v154
    %v191 = vunpack.c.l.b16 %v155
    %v192 = vunpack.c.l.b16 %v156
    %v193 = vunpack.c.l.b16 %v157
    %v194 = vunpack.c.l.b16 %v158
    %v195 = vunpack.c.l.b16 %v159
    %v196 = vunpack.c.l.b16 %v160
    %v197 = vunpack.c.l.b16 %v161
    %v198 = vpack.c.b16 %v183, %v182
    %v199 = vpack.c.b16 %v185, %v184
    %v200 = vpack.c.b16 %v187, %v186
    %v201 = vpack.c.b16 %v189, %v188
    %v202 = vpack.c.b16 %v191, %v190
    %v203 = vpack.c.b16 %v193, %v192
    %v204 = vpack.c.b16 %v195, %v194
    %v205 = vpack.c.b16 %v197, %v196
    %v210 = vunpack.c.l.b16 %v162
    %v211 = vunpack.c.l.b16 %v163
    %v212 = vunpack.c.l.b16 %v164
    %v213 = vunpack.c.l.b16 %v165
    %v214 = vpack.c.b16 %v211, %v210
    %v215 = vpack.c.b16 %v213, %v212
    %v219 = vsel %vm102, %v198, 0
    %v222 = vsel %vm102, %v199, 0
    %v225 = vsel %vm102, %v200, 0
    %v228 = vsel %vm102, %v201, 0
    %v231 = vsel %vm102, %v202, 0
    %v234 = vsel %vm102, %v203, 0
    %v237 = vsel %vm102, %v204, 0
    %v240 = vsel %vm102, %v205, 0
    %242 = vmatprep.subr.bf16.mxu0 0
    %243 = vmatpush1.bf16.msra.mxu0 0
    %244 = vmatprep.subr.bf16.mxu0 0
    %245 = vmatpush1.bf16.msra.mxu0 0
    %246 = vmatprep.subr.bf16.mxu0 0
    %247 = vmatpush1.bf16.msra.mxu0 0
    %248 = vmatprep.subr.bf16.mxu0 0
    %249 = vmatpush1.bf16.msra.mxu0 0
    %250 = vmatprep.subr.bf16.mxu0 0
    %251 = vmatpush1.bf16.msra.mxu0 0
    %252 = vmatprep.subr.bf16.mxu0 0
    %253 = vmatpush1.bf16.msra.mxu0 0
    %254 = vmatprep.subr.bf16.mxu0 0
    %255 = vmatpush1.bf16.msra.mxu0 %v215
    %256 = vmatprep.subr.bf16.mxu0 0
    %257 = vmatpush1.bf16.msra.mxu0 %v214
    %258 = vmatprep.subr.bf16.mxu0 0
    %259 = vmatpush2.bf16.msra.mxu0 0
    %260 = vmatprep.subr.bf16.mxu0 0
    %261 = vmatpush2.bf16.msra.mxu0 0
    %262 = vmatprep.subr.bf16.mxu0 0
    %263 = vmatpush2.bf16.msra.mxu0 0
    %264 = vmatprep.subr.bf16.mxu0 0
    %265 = vmatpush2.bf16.msra.mxu0 0
    %266 = vmatprep.subr.bf16.mxu0 0
    %267 = vmatpush2.bf16.msra.mxu0 0
    %268 = vmatprep.subr.bf16.mxu0 0
    %269 = vmatpush2.bf16.msra.mxu0 0
    %270 = vmatprep.subr.bf16.mxu0 0
    %271 = vmatpush2.bf16.msra.mxu0 0
    %272 = vmatprep.subr.bf16.mxu0 0
    %273 = vmatpush2.bf16.msra.mxu0 0
    %274 = vmatprep.mubr.bf16.mxu0 0
    %275 = vmatmul.mubr.bf16.gmra.mxu0 %v219
    %v276 = vpop.f32.mrf.mxu0
    %v277 = vadd.f32 0.0, %v276
    %v278 = vpop.f32.mrf.mxu0
    %v279 = vpop.f32.mrf.mxu0
    %v280 = vadd.f32 0.0, %v279
    %v281 = vpop.f32.mrf.mxu0
    %282 = vmatprep.mubr.bf16.mxu0 0
    %283 = vmatmul.mubr.bf16.gmra.mxu0 %v222
    %v284 = vpop.f32.mrf.mxu0
    %v285 = vadd.f32 0.0, %v284
    %v286 = vpop.f32.mrf.mxu0
    %v287 = vpop.f32.mrf.mxu0
    %v288 = vadd.f32 0.0, %v287
    %v289 = vpop.f32.mrf.mxu0
    %290 = vmatprep.mubr.bf16.mxu0 0
    %291 = vmatmul.mubr.bf16.gmra.mxu0 %v225
    %v292 = vpop.f32.mrf.mxu0
    %v293 = vadd.f32 0.0, %v292
    %v294 = vpop.f32.mrf.mxu0
    %v295 = vpop.f32.mrf.mxu0
    %v296 = vadd.f32 0.0, %v295
    %v297 = vpop.f32.mrf.mxu0
    %298 = vmatprep.mubr.bf16.mxu0 0
    %299 = vmatmul.mubr.bf16.gmra.mxu0 %v228
    %v300 = vpop.f32.mrf.mxu0
    %v301 = vadd.f32 0.0, %v300
    %v302 = vpop.f32.mrf.mxu0
    %v303 = vpop.f32.mrf.mxu0
    %v304 = vadd.f32 0.0, %v303
    %v305 = vpop.f32.mrf.mxu0
    %306 = vmatprep.mubr.bf16.mxu0 0
    %307 = vmatmul.mubr.bf16.gmra.mxu0 %v231
    %v308 = vpop.f32.mrf.mxu0
    %v309 = vadd.f32 0.0, %v308
    %v310 = vpop.f32.mrf.mxu0
    %v311 = vpop.f32.mrf.mxu0
    %v312 = vadd.f32 0.0, %v311
    %v313 = vpop.f32.mrf.mxu0
    %314 = vmatprep.mubr.bf16.mxu0 0
    %315 = vmatmul.mubr.bf16.gmra.mxu0 %v234
    %v316 = vpop.f32.mrf.mxu0
    %v317 = vadd.f32 0.0, %v316
    %v318 = vpop.f32.mrf.mxu0
    %v319 = vpop.f32.mrf.mxu0
    %v320 = vadd.f32 0.0, %v319
    %v321 = vpop.f32.mrf.mxu0
    %322 = vmatprep.mubr.bf16.mxu0 0
    %323 = vmatmul.mubr.bf16.gmra.mxu0 %v237
    %v324 = vpop.f32.mrf.mxu0
    %v325 = vadd.f32 0.0, %v324
    %v326 = vpop.f32.mrf.mxu0
    %v327 = vpop.f32.mrf.mxu0
    %v328 = vadd.f32 0.0, %v327
    %v329 = vpop.f32.mrf.mxu0
    %330 = vmatprep.mubr.bf16.mxu0 0
    %331 = vmatmul.mubr.bf16.gmra.mxu0 %v240
    %v332 = vpop.f32.mrf.mxu0
    %v333 = vadd.f32 0.0, %v332
    %v334 = vpop.f32.mrf.mxu0
    %v335 = vpop.f32.mrf.mxu0
    %v336 = vadd.f32 0.0, %v335
    %v337 = vpop.f32.mrf.mxu0
    %338 = vdwg.mxu0
    %v339 = vadd.f32 %v277, %v141
    %v340 = vadd.f32 %v280, %v141
    %v341 = vadd.f32 %v285, %v141
    %v342 = vadd.f32 %v288, %v141
    %v343 = vadd.f32 %v293, %v141
    %v344 = vadd.f32 %v296, %v141
    %v345 = vadd.f32 %v301, %v141
    %v346 = vadd.f32 %v304, %v141
    %v347 = vadd.f32 %v309, %v141
    %v348 = vadd.f32 %v312, %v141
    %v349 = vadd.f32 %v317, %v141
    %v350 = vadd.f32 %v320, %v141
    %v351 = vadd.f32 %v325, %v141
    %v352 = vadd.f32 %v328, %v141
    %v353 = vadd.f32 %v333, %v141
    %v354 = vadd.f32 %v336, %v141
    %v355 = vtanh.pop %v339
    %v356 = vtanh.pop %v340
    %v357 = vtanh.pop %v341
    %v358 = vtanh.pop %v342
    %v359 = vtanh.pop %v343
    %v360 = vtanh.pop %v344
    %v361 = vtanh.pop %v345
    %v362 = vtanh.pop %v346
    %v363 = vtanh.pop %v347
    %v364 = vtanh.pop %v348
    %v365 = vtanh.pop %v349
    %v366 = vtanh.pop %v350
    %v367 = vtanh.pop %v351
    %v368 = vtanh.pop %v352
    %v369 = vtanh.pop %v353
    %v370 = vtanh.pop %v354
    %v371 = vld [vmem:[%s5] sm:$0x1]
    %v373 = vlaneseq
    %v374 = vshrl.u32 %v373, 7
    %v375 = vsub.s32 0, %v374
    %v376 = vrot.slane %v371, %v375
    %v378 = vmul.f32 %v355, %v376
    %v379 = vmul.f32 %v356, %v376
    %v380 = vmul.f32 %v357, %v376
    %v381 = vmul.f32 %v358, %v376
    %v382 = vmul.f32 %v359, %v376
    %v383 = vmul.f32 %v360, %v376
    %v384 = vmul.f32 %v361, %v376
    %v385 = vmul.f32 %v362, %v376
    %v386 = vmul.f32 %v363, %v376
    %v387 = vmul.f32 %v364, %v376
    %v388 = vmul.f32 %v365, %v376
    %v389 = vmul.f32 %v366, %v376
    %v390 = vmul.f32 %v367, %v376
    %v391 = vmul.f32 %v368, %v376
    %v392 = vmul.f32 %v369, %v376
    %v393 = vmul.f32 %v370, %v376
    %v394 = vsel %vm102, %v378, 0.0
    %395 = vadd.xlane.f32.xlu0 %v394
    %v396 = vpop.xlane.xlu0 %395
    %v397 = vsel %vm102, %v379, 0.0
    %398 = vadd.xlane.f32.xlu0 %v397
    %v399 = vpop.xlane.xlu0 %398
    %v400 = vsel %vm102, %v380, 0.0
    %401 = vadd.xlane.f32.xlu0 %v400
    %v402 = vpop.xlane.xlu0 %401
    %v403 = vsel %vm102, %v381, 0.0
    %404 = vadd.xlane.f32.xlu0 %v403
    %v405 = vpop.xlane.xlu0 %404
    %v406 = vsel %vm102, %v382, 0.0
    %407 = vadd.xlane.f32.xlu0 %v406
    %v408 = vpop.xlane.xlu0 %407
    %v409 = vsel %vm102, %v383, 0.0
    %410 = vadd.xlane.f32.xlu0 %v409
    %v411 = vpop.xlane.xlu0 %410
    %v412 = vsel %vm102, %v384, 0.0
    %413 = vadd.xlane.f32.xlu0 %v412
    %v414 = vpop.xlane.xlu0 %413
    %v415 = vsel %vm102, %v385, 0.0
    %416 = vadd.xlane.f32.xlu0 %v415
    %v417 = vpop.xlane.xlu0 %416
    %v418 = vsel %vm102, %v386, 0.0
    %419 = vadd.xlane.f32.xlu0 %v418
    %v420 = vpop.xlane.xlu0 %419
    %v421 = vsel %vm102, %v387, 0.0
    %422 = vadd.xlane.f32.xlu0 %v421
    %v423 = vpop.xlane.xlu0 %422
    %v424 = vsel %vm102, %v388, 0.0
    %425 = vadd.xlane.f32.xlu0 %v424
    %v426 = vpop.xlane.xlu0 %425
    %v427 = vsel %vm102, %v389, 0.0
    %428 = vadd.xlane.f32.xlu0 %v427
    %v429 = vpop.xlane.xlu0 %428
    %v430 = vsel %vm102, %v390, 0.0
    %431 = vadd.xlane.f32.xlu0 %v430
    %v432 = vpop.xlane.xlu0 %431
    %v433 = vsel %vm102, %v391, 0.0
    %434 = vadd.xlane.f32.xlu0 %v433
    %v435 = vpop.xlane.xlu0 %434
    %v436 = vsel %vm102, %v392, 0.0
    %437 = vadd.xlane.f32.xlu0 %v436
    %v438 = vpop.xlane.xlu0 %437
    %v439 = vsel %vm102, %v393, 0.0
    %440 = vadd.xlane.f32.xlu0 %v439
    %v441 = vpop.xlane.xlu0 %440
    %v458 = vlaneseq
    %v459 = vand.u32 %v458, 127
    %v460 = vlaneseq
    %v461 = vshrl.u32 %v460, 7
    %v462 = vsub.s32 %v459, %v461
    %v463 = vrot.slane %v396, %v462
    %v464 = vlaneseq
    %v465 = vshrl.u32 %v464, 7
    %v466 = vsub.s32 %v459, %v465
    %v467 = vrot.slane %v399, %v466
    %v468 = vlaneseq
    %v469 = vshrl.u32 %v468, 7
    %v470 = vsub.s32 %v459, %v469
    %v471 = vrot.slane %v402, %v470
    %v472 = vlaneseq
    %v473 = vshrl.u32 %v472, 7
    %v474 = vsub.s32 %v459, %v473
    %v475 = vrot.slane %v405, %v474
    %v476 = vlaneseq
    %v477 = vshrl.u32 %v476, 7
    %v478 = vsub.s32 %v459, %v477
    %v479 = vrot.slane %v408, %v478
    %v480 = vlaneseq
    %v481 = vshrl.u32 %v480, 7
    %v482 = vsub.s32 %v459, %v481
    %v483 = vrot.slane %v411, %v482
    %v484 = vlaneseq
    %v485 = vshrl.u32 %v484, 7
    %v486 = vsub.s32 %v459, %v485
    %v487 = vrot.slane %v414, %v486
    %v488 = vlaneseq
    %v489 = vshrl.u32 %v488, 7
    %v490 = vsub.s32 %v459, %v489
    %v491 = vrot.slane %v417, %v490
    %v492 = vlaneseq
    %v493 = vshrl.u32 %v492, 7
    %v494 = vsub.s32 %v459, %v493
    %v495 = vrot.slane %v420, %v494
    %v496 = vlaneseq
    %v497 = vshrl.u32 %v496, 7
    %v498 = vsub.s32 %v459, %v497
    %v499 = vrot.slane %v423, %v498
    %v500 = vlaneseq
    %v501 = vshrl.u32 %v500, 7
    %v502 = vsub.s32 %v459, %v501
    %v503 = vrot.slane %v426, %v502
    %v504 = vlaneseq
    %v505 = vshrl.u32 %v504, 7
    %v506 = vsub.s32 %v459, %v505
    %v507 = vrot.slane %v429, %v506
    %v508 = vlaneseq
    %v509 = vshrl.u32 %v508, 7
    %v510 = vsub.s32 %v459, %v509
    %v511 = vrot.slane %v432, %v510
    %v512 = vlaneseq
    %v513 = vshrl.u32 %v512, 7
    %v514 = vsub.s32 %v459, %v513
    %v515 = vrot.slane %v435, %v514
    %v516 = vlaneseq
    %v517 = vshrl.u32 %v516, 7
    %v518 = vsub.s32 %v459, %v517
    %v519 = vrot.slane %v438, %v518
    %v520 = vlaneseq
    %v521 = vshrl.u32 %v520, 7
    %v522 = vsub.s32 %v459, %v521
    %v523 = vrot.slane %v441, %v522
    %vm524 = vcmask 1041409
    %v525 = vsel %vm524, %v467, %v463
    %vm526 = vcmask 1042434
    %v527 = vsel %vm526, %v471, %v525
    %vm528 = vcmask 1043459
    %v529 = vsel %vm528, %v475, %v527
    %vm530 = vcmask 1044484
    %v531 = vsel %vm530, %v479, %v529
    %vm532 = vcmask 1045509
    %v533 = vsel %vm532, %v483, %v531
    %vm534 = vcmask 1046534
    %v535 = vsel %vm534, %v487, %v533
    %vm536 = vcmask 1047559
    %v537 = vsel %vm536, %v491, %v535
    %v538 = vsel %vm524, %v499, %v495
    %v539 = vsel %vm526, %v503, %v538
    %v540 = vsel %vm528, %v507, %v539
    %v541 = vsel %vm530, %v511, %v540
    %v542 = vsel %vm532, %v515, %v541
    %v543 = vsel %vm534, %v519, %v542
    %v544 = vsel %vm536, %v523, %v543
    %547 = vxpose.xlu0.b32.start [1/16] %v537, 128
    %548 = vxpose.xlu0.b32.cont [2/16] %v544, 128
    %549 = vxpose.xlu0.b32.cont [3/16] 0.0, 128
    %550 = vxpose.xlu0.b32.cont [4/16] 0.0, 128
    %551 = vxpose.xlu0.b32.cont [5/16] 0.0, 128
    %552 = vxpose.xlu0.b32.cont [6/16] 0.0, 128
    %553 = vxpose.xlu0.b32.cont [7/16] 0.0, 128
    %554 = vxpose.xlu0.b32.cont [8/16] 0.0, 128
    %555 = vxpose.xlu0.b32.cont [9/16] 0.0, 128
    %556 = vxpose.xlu0.b32.cont [10/16] 0.0, 128
    %557 = vxpose.xlu0.b32.cont [11/16] 0.0, 128
    %558 = vxpose.xlu0.b32.cont [12/16] 0.0, 128
    %559 = vxpose.xlu0.b32.cont [13/16] 0.0, 128
    %560 = vxpose.xlu0.b32.cont [14/16] 0.0, 128
    %561 = vxpose.xlu0.b32.cont [15/16] 0.0, 128
    %562 = vxpose.xlu0.b32.end [16/16] 0.0, 128
    %v563 = vpop.trf.xlu0
    %v564 = vpop.trf.xlu0
    %v565 = vpop.trf.xlu0
    %v566 = vpop.trf.xlu0
    %v567 = vpop.trf.xlu0
    %v568 = vpop.trf.xlu0
    %v569 = vpop.trf.xlu0
    %v570 = vpop.trf.xlu0
    %v571 = vpop.trf.xlu0
    %v572 = vpop.trf.xlu0
    %v573 = vpop.trf.xlu0
    %v574 = vpop.trf.xlu0
    %v575 = vpop.trf.xlu0
    %v576 = vpop.trf.xlu0
    %v577 = vpop.trf.xlu0
    %v578 = vpop.trf.xlu0
    %vm579 = vcmask 130048
    %v580 = vsel %vm579, %v563, -inf
    %581 = vmax.xlane.f32.xlu0 %v580
    %v582 = vpop.xlane.xlu0 %581
    %v583 = vsub.f32 %v563, %v582
    %v584 = vmul.f32 %v583, 1.442695
    %v585 = vpow.pop %v584
    %v586 = vsel %vm579, %v585, 0.0
    %587 = vadd.xlane.f32.xlu0 %v586
    %v588 = vpop.xlane.xlu0 %587
    %v589 = vrcp.pop %v588
    %v590 = vmul.f32 %v585, %v589
    %591 = vst.msk [vmem:[#allocation10] sm:$0xff] %vm579, %v590
    // Predicated region
    $region42: #{tpu_custom_call.1} parent=1 // pred_check
      _
    $region43: #{tpu_custom_call.1} parent=1 // pred_check_branch
      %593 = sbr.rel (0) target = $region45
    $region44: #{tpu_custom_call.1} parent=1 // pred_region
      %s595 = ssub.s32 128, 128
      %596 = vsyncadd [#allocation4], %s595
      %s598 = sshll.u32 [#allocation10], 4
      %s599 = int_to_ptr.vmem [resolvable:$true] %s598
      %601 = dma.vmem_to_hbm [thread:$0]  %s599, 128, %s6, [#allocation4]
    $region45: #{tpu_custom_call.1} parent=1 // pred_fallthru
      _
    // Predicated region
    $region46: #{tpu_custom_call.1} parent=1 // pred_check
      _
    $region47: #{tpu_custom_call.1} parent=1 // pred_check_branch
      %603 = sbr.rel (0) target = $region49
    $region48: #{tpu_custom_call.1} parent=1 // pred_region
      %604 = dma.done [#allocation4], 128
    $region49: #{tpu_custom_call.1} parent=1 // pred_fallthru
      _
    %605 = vsyncpa [#allocation3], 1
    %606 = vsyncpa [#allocation6], 1
    %607 = vsyncpa [#allocation9], 1
    %608 = vsyncpa [#allocation4], 1

</llo_original>
